<compile_context>
chip_gen: v7x
topology: tpu7x:2x2x1
jax: 0.10.0
libtpu: 0.0.40
codegen_flags: <defaults>
</compile_context>

<pallas_src>
import functools

import jax
import jax.numpy as jnp
from jax.experimental import pallas as pl
from jax.experimental.pallas import tpu as pltpu


def _attention_kernel(x_ref, o_ref, acc_ref, *, inv_seq):
    """One (bt, ts, H) block: accumulate the sequence sum, NaN-poison bad rows."""
    s = pl.program_id(1)

    @pl.when(s == 0)
    def _():
        acc_ref[...] = jnp.zeros_like(acc_ref)

    x = x_ref[...]                                            # (bt, ts, H) f32

    # Partial sequence sum -- VPU/XLU sublane reduce, no MXU needed.
    part = jnp.sum(x, axis=1)                                 # (bt, H)

    # Non-finite detector: abs(x) < inf is False for NaN and +/-Inf.
    nonfinite = jnp.where(jnp.abs(x) < jnp.float32(jnp.inf), 0.0, 1.0)
    bad = jnp.max(nonfinite, axis=2)                          # (bt, ts)
    bad = jnp.max(bad, axis=1, keepdims=True)                 # (bt, 1)

    # NaN-poison the whole batch row if any non-finite value was seen; the NaN
    # then propagates through the remaining accumulation steps.
    acc_ref[...] += jnp.where(bad > 0.0, jnp.full_like(part, jnp.nan), part)

    @pl.when(s == pl.num_programs(1) - 1)
    def _():
        o_ref[...] = (acc_ref[...] * inv_seq).astype(o_ref.dtype)


def attention_forward(lstm_out):
    """lstm_out: (B, S, H) float32 -> (B, H) float32 (matches Attention.forward)."""
    B, S, H = lstm_out.shape
    inv_seq = 1.0 / S

    # ---- generation-aware VMEM budget -------------------------------------
    try:
        vmem_cap = int(pltpu.get_tpu_info().vmem_capacity_bytes)
    except Exception:
        vmem_cap = 128 << 20
    if vmem_cap <= (64 << 20):        # v7x: 64 MiB physical -> leave headroom
        vmem_limit = 48 << 20
    else:                             # v5e / v6e: 128 MiB physical
        vmem_limit = 64 << 20
    budget = int(vmem_limit * 0.7)

    # ---- tile sizing (padded VMEM footprint) -------------------------------
    h_pad = pl.cdiv(H, 128) * 128                    # lane padding
    b_pad8 = pl.cdiv(B, 8) * 8

    def block_bytes(bt_, ts_):
        ts_pad = pl.cdiv(ts_, 8) * 8                 # sublane padding
        # ~2x double-buffered input + 1x elementwise temporaries + acc/out rows
        return 4 * (3 * bt_ * ts_pad * h_pad + 3 * bt_ * h_pad)

    if block_bytes(8, S) <= budget:
        ts = S                                       # whole sequence per step
        bt = max(8, (budget // max(1, block_bytes(1, S))) // 8 * 8)
    else:
        bt = 8                                       # tile the sequence axis too
        ts = max(8, (budget // (4 * 3 * 8 * h_pad)) // 8 * 8)
        ts = min(ts, pl.cdiv(S, 8) * 8)
    # Keep >= ~4 batch grid steps when the batch allows it (dual-TC sharding on
    # v7x + DMA pipelining); never below 8 rows (sublane tiling of the output).
    bt = int(min(bt, max(8, (b_pad8 // 4) // 8 * 8), b_pad8))
    ts = int(ts)

    b_pad = pl.cdiv(B, bt) * bt
    s_pad = pl.cdiv(S, ts) * ts
    x = lstm_out
    if (b_pad, s_pad) != (B, S):
        # zero padding: finite, contributes 0 to the sum, never poisons.
        x = jnp.pad(x, ((0, b_pad - B), (0, s_pad - S), (0, 0)))

    kernel = functools.partial(_attention_kernel, inv_seq=inv_seq)

    out = pl.pallas_call(
        kernel,
        out_shape=jax.ShapeDtypeStruct((b_pad, H), lstm_out.dtype),
        grid_spec=pltpu.PrefetchScalarGridSpec(
            num_scalar_prefetch=0,
            grid=(b_pad // bt, s_pad // ts),
            in_specs=[pl.BlockSpec((bt, ts, H), lambda b, s: (b, s, 0))],
            out_specs=pl.BlockSpec((bt, H), lambda b, s: (b, 0)),
            scratch_shapes=[pltpu.VMEM((bt, H), jnp.float32)],
        ),
        compiler_params=pltpu.CompilerParams(
            dimension_semantics=("parallel", "arbitrary"),
            vmem_limit_bytes=vmem_limit,
        ),
        cost_estimate=pl.CostEstimate(
            flops=2 * B * S * H,
            transcendentals=0,
            bytes_accessed=4 * (B * S * H + B * H),
        ),
    )(x)

    return out[:B] if b_pad != B else out


def _reference(lstm_out):
    """Pure-JAX reference matching the PyTorch forward exactly."""
    H = lstm_out.shape[-1]
    scale = 1.0 / (H ** 0.5)
    scores = jnp.einsum("bsh,bth->bst", lstm_out, lstm_out) * scale
    weights = jax.nn.softmax(scores, axis=1)   # dim=1, as in the module
    context = jnp.einsum("bst,bth->bsh", weights, lstm_out)
    return jnp.mean(context, axis=1)


if __name__ == "__main__":
    key = jax.random.PRNGKey(0)
    B, S, H = 2, 8, 32
    lstm_out = jax.random.normal(key, (B, S, H), dtype=jnp.float32)

    out = jax.block_until_ready(attention_forward(lstm_out))
    ref = _reference(lstm_out)
    assert out.shape == (B, H), out.shape
    assert jnp.allclose(out, ref, atol=1e-5, rtol=1e-5), (
        float(jnp.max(jnp.abs(out - ref)))
    )

    # Non-finite propagation check: a single NaN poisons its batch row only.
    x_bad = lstm_out.at[1, 3, 5].set(jnp.nan)
    out_bad = jax.block_until_ready(attention_forward(x_bad))
    assert bool(jnp.all(jnp.isnan(out_bad[1])))
    assert bool(jnp.allclose(out_bad[0], ref[0], atol=1e-5, rtol=1e-5))

    print("KERNEL_OK")
</pallas_src>

<mosaic_0001>
module attributes {stable_mosaic.version = 11 : i64} {
  func.func @_attention_kernel(%arg0: i32, %arg1: i32, %arg2: memref<8x8x32xf32, #tpu.memory_space<vmem>>, %arg3: memref<8x32xf32, #tpu.memory_space<vmem>>, %arg4: memref<8x32xf32, #tpu.memory_space<vmem>>) attributes {dimension_semantics = [#tpu.dimension_semantics<parallel>, #tpu.dimension_semantics<arbitrary>], iteration_bounds = array<i64: 1, 1>, scalar_prefetch = 0 : i64, scratch_operands = 1 : i64, tpu.core_type = #tpu.core_type<tc>, window_params = [{transform_indices = @transform_0, window_bounds = array<i64: 8, 8, 32>}, {transform_indices = @transform_1, window_bounds = array<i64: 8, 32>}]} {
    %c0_i32 = arith.constant 0 : i32
    %0 = arith.cmpi eq, %arg1, %c0_i32 : i32
    %1 = arith.extui %0 : i1 to i32
    %c0_i32_0 = arith.constant 0 : i32
    %2 = arith.cmpi ne, %1, %c0_i32_0 : i32
    scf.if %2 {
      %cst_16 = arith.constant 0.000000e+00 : f32
      %26 = vector.broadcast %cst_16 : f32 to vector<8x32xf32>
      %c0_17 = arith.constant 0 : index
      %c0_18 = arith.constant 0 : index
      %27 = vector.load %arg4[%c0_17, %c0_18] : memref<8x32xf32, #tpu.memory_space<vmem>>, vector<8x32xf32>
      tpu.vector_store %arg4[%c0_17, %c0_18], %26 {strides = array<i32>} : memref<8x32xf32, #tpu.memory_space<vmem>>, vector<8x32xf32>,
    } else {
    }
    %c0 = arith.constant 0 : index
    %c0_1 = arith.constant 0 : index
    %c0_2 = arith.constant 0 : index
    %3 = vector.load %arg2[%c0, %c0_1, %c0_2] : memref<8x8x32xf32, #tpu.memory_space<vmem>>, vector<8x8x32xf32>
    %cst = arith.constant dense<0.000000e+00> : vector<8x32xf32>
    %4 = vector.multi_reduction <add>, %3, %cst [1] : vector<8x8x32xf32> to vector<8x32xf32>
    %5 = math.absf %3 : vector<8x8x32xf32>
    %cst_3 = arith.constant 0x7F800000 : f32
    %6 = vector.broadcast %cst_3 : f32 to vector<8x8x32xf32>
    %7 = arith.cmpf olt, %5, %6 : vector<8x8x32xf32>
    %cst_4 = arith.constant 0.000000e+00 : f32
    %cst_5 = arith.constant 1.000000e+00 : f32
    %8 = vector.broadcast %cst_4 : f32 to vector<8x8x32xf32>
    %9 = vector.broadcast %cst_5 : f32 to vector<8x8x32xf32>
    %10 = arith.select %7, %8, %9 : vector<8x8x32xi1>, vector<8x8x32xf32>
    %cst_6 = arith.constant dense<0xFF800000> : vector<8x8xf32>
    %11 = vector.multi_reduction <maximumf>, %10, %cst_6 [2] : vector<8x8x32xf32> to vector<8x8xf32>
    %cst_7 = arith.constant dense<0xFF800000> : vector<8xf32>
    %12 = vector.multi_reduction <maximumf>, %11, %cst_7 [1] : vector<8x8xf32> to vector<8xf32>
    %13 = vector.shape_cast %12 : vector<8xf32> to vector<8x1xf32>
    %c0_8 = arith.constant 0 : index
    %c0_9 = arith.constant 0 : index
    %14 = vector.load %arg4[%c0_8, %c0_9] : memref<8x32xf32, #tpu.memory_space<vmem>>, vector<8x32xf32>
    %cst_10 = arith.constant 0.000000e+00 : f32
    %15 = vector.broadcast %cst_10 : f32 to vector<8x1xf32>
    %16 = arith.cmpf ogt, %13, %15 : vector<8x1xf32>
    %cst_11 = arith.constant 0x7FC00000 : f32
    %17 = vector.broadcast %cst_11 : f32 to vector<8x32xf32>
    %18 = vector.shape_cast %16 : vector<8x1xi1> to vector<8x1xi1>
    %19 = vector.broadcast %18 : vector<8x1xi1> to vector<8x32xi1>
    %20 = arith.select %19, %17, %4 : vector<8x32xi1>, vector<8x32xf32>
    %21 = arith.addf %14, %20 : vector<8x32xf32>
    %c0_12 = arith.constant 0 : index
    %c0_13 = arith.constant 0 : index
    %22 = vector.load %arg4[%c0_12, %c0_13] : memref<8x32xf32, #tpu.memory_space<vmem>>, vector<8x32xf32>
    tpu.vector_store %arg4[%c0_12, %c0_13], %21 {strides = array<i32>} : memref<8x32xf32, #tpu.memory_space<vmem>>, vector<8x32xf32>,
    %c0_i32_14 = arith.constant 0 : i32
    %23 = arith.cmpi eq, %arg1, %c0_i32_14 : i32
    %24 = arith.extui %23 : i1 to i32
    %c0_i32_15 = arith.constant 0 : i32
    %25 = arith.cmpi ne, %24, %c0_i32_15 : i32
    scf.if %25 {
      %c0_16 = arith.constant 0 : index
      %c0_17 = arith.constant 0 : index
      %26 = vector.load %arg4[%c0_16, %c0_17] : memref<8x32xf32, #tpu.memory_space<vmem>>, vector<8x32xf32>
      %cst_18 = arith.constant 1.250000e-01 : f32
      %27 = vector.broadcast %cst_18 : f32 to vector<8x32xf32>
      %28 = arith.mulf %26, %27 : vector<8x32xf32>
      %c0_19 = arith.constant 0 : index
      %c0_20 = arith.constant 0 : index
      %29 = vector.load %arg3[%c0_19, %c0_20] : memref<8x32xf32, #tpu.memory_space<vmem>>, vector<8x32xf32>
      tpu.vector_store %arg3[%c0_19, %c0_20], %28 {strides = array<i32>} : memref<8x32xf32, #tpu.memory_space<vmem>>, vector<8x32xf32>,
    } else {
    }
    return
  }
  func.func @transform_0(%arg0: i32, %arg1: i32) -> (i32, i32, i32) {
    %c0_i32 = arith.constant 0 : i32
    %c0_i32_0 = arith.constant 0 : i32
    return %arg0, %arg1, %c0_i32 : i32, i32, i32
  }
  func.func @transform_1(%arg0: i32, %arg1: i32) -> (i32, i32) {
    %c0_i32 = arith.constant 0 : i32
    %c0_i32_0 = arith.constant 0 : i32
    return %arg0, %c0_i32 : i32, i32
  }
}

</mosaic_0001>

<llo_original>
// kernel: tpu_custom_call.1
$region0: #{tpu_custom_call.1}
  #allocation0 [shape = 'u32[]', space=smem, size = 0x4, offset = 0x4, fixed_abs, tag = 'smem constant byte address 0x4 - core index']
  #allocation1 [shape = 'u32[144,128]{1,0:T(1,128)}', space=vmem, size = 0x12000, scoped, tag = 'internal scratch']
  #allocation2 [shape = 'f32[8,32]{1,0:T(8,128)}', space=vmem, size = 0x1000, scoped, tag = 'scratch operand']
  %s0 = inlined_call_operand.hbm [shape: f32[8,8,32], index: 0, kind: input, shape index: {}]
  %s1 = inlined_call_operand.hbm [shape: f32[8,32], index: 1, kind: output, shape index: {}]
  %s2 = sld [smem:[#allocation0]]
  $region26: #{tpu_custom_call.1} parent=0
    _
  %s4 = ssub.s32 1, %s2
  %s5 = scalar_select 0, %s4, %s2
  $region1: #{tpu_custom_call.1} parent=0
    #allocation3 [shape = 'u8[32768]{0}', space=vmem, size = 0x8000, scoped, tag = 'input window, operand 0, single buffered']
    #allocation4 [shape = 's32[1]{0}', space=sflag, size = 0x4, scoped, tag = 'scoped memory for tpu_custom_call.1']
    #allocation5 [shape = 's32[1]{0}', space=sflag, size = 0x4, scoped, tag = 'scoped memory for tpu_custom_call.1']
    #allocation6 [shape = 'u8[4096]{0}', space=vmem, size = 0x1000, scoped, tag = 'output window, operand 0, single buffered']
    %6 = vsyncpa [#allocation4], 0
    %7 = vsyncpa [#allocation5], 0
    // Predicated region
    $region2: #{tpu_custom_call.1} parent=1 // pred_check
      _
    $region3: #{tpu_custom_call.1} parent=1 // pred_check_branch
      %9 = sbr.rel (0) target = $region5
    $region4: #{tpu_custom_call.1} parent=1 // pred_region
      %s11 = ssub.s32 1024, 1024
      %12 = vsyncadd [#allocation4], %s11
      %s13 = sshll.u32 [#allocation3], 4
      %s14 = int_to_ptr.vmem [resolvable:$true] %s13
      %19 = dma.hbm_to_vmem [thread:$0]  %s0, 1024, %s14, [#allocation4], 128, 128, 8
    $region5: #{tpu_custom_call.1} parent=1 // pred_fallthru
      _
    // Predicated region
    $region6: #{tpu_custom_call.1} parent=1 // pred_check
      _
    $region7: #{tpu_custom_call.1} parent=1 // pred_check_branch
      %21 = sbr.rel (0) target = $region9
    $region8: #{tpu_custom_call.1} parent=1 // pred_region
      %22 = dma.done [#allocation4], 1024
    $region9: #{tpu_custom_call.1} parent=1 // pred_fallthru
      _
    %p23 = scmp.eq.s32.totalorder 0, 0
    // Predicated region
    $region10: #{tpu_custom_call.1} parent=1 // pred_check
      %p24 = pneg %p23
    $region11: #{tpu_custom_call.1} parent=1 // pred_check_branch
      %26 = sbr.rel (%p24) target = $region13
    $region12: #{tpu_custom_call.1} parent=1 // pred_region
      %vm27 = vcmask 261120
      %28 = vst.msk [vmem:[#allocation2] sm:$0xff] %vm27, 0.0
    $region13: #{tpu_custom_call.1} parent=1 // pred_fallthru
      _
    %v29 = vld [vmem:[#allocation3] sm:$0xff]
    %v30 = vld [vmem:[#allocation3 + $0x8] sm:$0xff]
    %v31 = vld [vmem:[#allocation3 + $0x10] sm:$0xff]
    %v32 = vld [vmem:[#allocation3 + $0x18] sm:$0xff]
    %v33 = vld [vmem:[#allocation3 + $0x20] sm:$0xff]
    %v34 = vld [vmem:[#allocation3 + $0x28] sm:$0xff]
    %v35 = vld [vmem:[#allocation3 + $0x30] sm:$0xff]
    %v36 = vld [vmem:[#allocation3 + $0x38] sm:$0xff]
    %vm37 = vcmask 261120
    %v38 = vsel %vm37, %v29, 0.0
    %v39 = vrot.slane %v38, 4
    %v40 = vadd.f32 %v38, %v39
    %v41 = vrot.slane %v40, 2
    %v42 = vadd.f32 %v40, %v41
    %v43 = vrot.slane %v42, 1
    %v44 = vadd.f32 %v42, %v43
    %v45 = vsel %vm37, %v30, 0.0
    %v46 = vrot.slane %v45, 4
    %v47 = vadd.f32 %v45, %v46
    %v48 = vrot.slane %v47, 2
    %v49 = vadd.f32 %v47, %v48
    %v50 = vrot.slane %v49, 1
    %v51 = vadd.f32 %v49, %v50
    %v52 = vsel %vm37, %v31, 0.0
    %v53 = vrot.slane %v52, 4
    %v54 = vadd.f32 %v52, %v53
    %v55 = vrot.slane %v54, 2
    %v56 = vadd.f32 %v54, %v55
    %v57 = vrot.slane %v56, 1
    %v58 = vadd.f32 %v56, %v57
    %v59 = vsel %vm37, %v32, 0.0
    %v60 = vrot.slane %v59, 4
    %v61 = vadd.f32 %v59, %v60
    %v62 = vrot.slane %v61, 2
    %v63 = vadd.f32 %v61, %v62
    %v64 = vrot.slane %v63, 1
    %v65 = vadd.f32 %v63, %v64
    %v66 = vsel %vm37, %v33, 0.0
    %v67 = vrot.slane %v66, 4
    %v68 = vadd.f32 %v66, %v67
    %v69 = vrot.slane %v68, 2
    %v70 = vadd.f32 %v68, %v69
    %v71 = vrot.slane %v70, 1
    %v72 = vadd.f32 %v70, %v71
    %v73 = vsel %vm37, %v34, 0.0
    %v74 = vrot.slane %v73, 4
    %v75 = vadd.f32 %v73, %v74
    %v76 = vrot.slane %v75, 2
    %v77 = vadd.f32 %v75, %v76
    %v78 = vrot.slane %v77, 1
    %v79 = vadd.f32 %v77, %v78
    %v80 = vsel %vm37, %v35, 0.0
    %v81 = vrot.slane %v80, 4
    %v82 = vadd.f32 %v80, %v81
    %v83 = vrot.slane %v82, 2
    %v84 = vadd.f32 %v82, %v83
    %v85 = vrot.slane %v84, 1
    %v86 = vadd.f32 %v84, %v85
    %v87 = vsel %vm37, %v36, 0.0
    %v88 = vrot.slane %v87, 4
    %v89 = vadd.f32 %v87, %v88
    %v90 = vrot.slane %v89, 2
    %v91 = vadd.f32 %v89, %v90
    %v92 = vrot.slane %v91, 1
    %v93 = vadd.f32 %v91, %v92
    %v94 = vand.u32 2147483647, %v29
    %v95 = vand.u32 2147483647, %v30
    %v96 = vand.u32 2147483647, %v31
    %v97 = vand.u32 2147483647, %v32
    %v98 = vand.u32 2147483647, %v33
    %v99 = vand.u32 2147483647, %v34
    %v100 = vand.u32 2147483647, %v35
    %v101 = vand.u32 2147483647, %v36
    %vm102 = vcmp.lt.f32.partialorder %v94, inf
    %vm103 = vcmp.lt.f32.partialorder %v95, inf
    %vm104 = vcmp.lt.f32.partialorder %v96, inf
    %vm105 = vcmp.lt.f32.partialorder %v97, inf
    %vm106 = vcmp.lt.f32.partialorder %v98, inf
    %vm107 = vcmp.lt.f32.partialorder %v99, inf
    %vm108 = vcmp.lt.f32.partialorder %v100, inf
    %vm109 = vcmp.lt.f32.partialorder %v101, inf
    %v110 = vsel %vm102, 0.0, 1.0
    %v111 = vsel %vm103, 0.0, 1.0
    %v112 = vsel %vm104, 0.0, 1.0
    %v113 = vsel %vm105, 0.0, 1.0
    %v114 = vsel %vm106, 0.0, 1.0
    %v115 = vsel %vm107, 0.0, 1.0
    %v116 = vsel %vm108, 0.0, 1.0
    %v117 = vsel %vm109, 0.0, 1.0
    %v118 = vsel %vm37, %v110, -inf
    %119 = vmax.xlane.f32.xlu0 %v118
    %v120 = vpop.xlane.xlu0 %119
    %v121 = vsel %vm37, %v111, -inf
    %122 = vmax.xlane.f32.xlu0 %v121
    %v123 = vpop.xlane.xlu0 %122
    %v124 = vsel %vm37, %v112, -inf
    %125 = vmax.xlane.f32.xlu0 %v124
    %v126 = vpop.xlane.xlu0 %125
    %v127 = vsel %vm37, %v113, -inf
    %128 = vmax.xlane.f32.xlu0 %v127
    %v129 = vpop.xlane.xlu0 %128
    %v130 = vsel %vm37, %v114, -inf
    %131 = vmax.xlane.f32.xlu0 %v130
    %v132 = vpop.xlane.xlu0 %131
    %v133 = vsel %vm37, %v115, -inf
    %134 = vmax.xlane.f32.xlu0 %v133
    %v135 = vpop.xlane.xlu0 %134
    %v136 = vsel %vm37, %v116, -inf
    %137 = vmax.xlane.f32.xlu0 %v136
    %v138 = vpop.xlane.xlu0 %137
    %v139 = vsel %vm37, %v117, -inf
    %140 = vmax.xlane.f32.xlu0 %v139
    %v141 = vpop.xlane.xlu0 %140
    %v150 = vlaneseq
    %v151 = vand.u32 %v150, 127
    %v152 = vlaneseq
    %v153 = vshrl.u32 %v152, 7
    %v154 = vsub.s32 %v151, %v153
    %v155 = vrot.slane %v120, %v154
    %v156 = vlaneseq
    %v157 = vshrl.u32 %v156, 7
    %v158 = vsub.s32 %v151, %v157
    %v159 = vrot.slane %v123, %v158
    %v160 = vlaneseq
    %v161 = vshrl.u32 %v160, 7
    %v162 = vsub.s32 %v151, %v161
    %v163 = vrot.slane %v126, %v162
    %v164 = vlaneseq
    %v165 = vshrl.u32 %v164, 7
    %v166 = vsub.s32 %v151, %v165
    %v167 = vrot.slane %v129, %v166
    %v168 = vlaneseq
    %v169 = vshrl.u32 %v168, 7
    %v170 = vsub.s32 %v151, %v169
    %v171 = vrot.slane %v132, %v170
    %v172 = vlaneseq
    %v173 = vshrl.u32 %v172, 7
    %v174 = vsub.s32 %v151, %v173
    %v175 = vrot.slane %v135, %v174
    %v176 = vlaneseq
    %v177 = vshrl.u32 %v176, 7
    %v178 = vsub.s32 %v151, %v177
    %v179 = vrot.slane %v138, %v178
    %v180 = vlaneseq
    %v181 = vshrl.u32 %v180, 7
    %v182 = vsub.s32 %v151, %v181
    %v183 = vrot.slane %v141, %v182
    %vm184 = vcmask 1041409
    %v185 = vsel %vm184, %v159, %v155
    %vm186 = vcmask 1042434
    %v187 = vsel %vm186, %v163, %v185
    %vm188 = vcmask 1043459
    %v189 = vsel %vm188, %v167, %v187
    %vm190 = vcmask 1044484
    %v191 = vsel %vm190, %v171, %v189
    %vm192 = vcmask 1045509
    %v193 = vsel %vm192, %v175, %v191
    %vm194 = vcmask 1046534
    %v195 = vsel %vm194, %v179, %v193
    %vm196 = vcmask 1047559
    %v197 = vsel %vm196, %v183, %v195
    %vm199 = vcmask 64512
    %v200 = vsel %vm199, %v197, -inf
    %201 = vmax.xlane.f32.xlu0 %v200
    %v202 = vpop.xlane.xlu0 %201
    %v203 = vld [vmem:[#allocation2] sm:$0xff]
    %vm204 = vcmp.gt.f32.partialorder %v202, 0.0
    %v205 = vsel %vm204, 1, 0
    %vm206 = vcmp.eq.s32.totalorder %v205, 1
    %v215 = vsel %vm184, %v51, %v44
    %v216 = vsel %vm186, %v58, %v215
    %v217 = vsel %vm188, %v65, %v216
    %v218 = vsel %vm190, %v72, %v217
    %v219 = vsel %vm192, %v79, %v218
    %v220 = vsel %vm194, %v86, %v219
    %v221 = vsel %vm196, %v93, %v220
    %v223 = vsel %vm206, nan, %v221
    %v224 = vadd.f32 %v203, %v223
    %225 = vst.msk [vmem:[#allocation2] sm:$0xff] %vm37, %v224
    // Predicated region
    $region14: #{tpu_custom_call.1} parent=1 // pred_check
      %p226 = pneg %p23
    $region15: #{tpu_custom_call.1} parent=1 // pred_check_branch
      %228 = sbr.rel (%p226) target = $region17
    $region16: #{tpu_custom_call.1} parent=1 // pred_region
      %v229 = vld [vmem:[#allocation2] sm:$0xff]
      %v230 = vmul.f32 %v229, 0.125
      %231 = vst.msk [vmem:[#allocation6] sm:$0xff] %vm37, %v230
    $region17: #{tpu_custom_call.1} parent=1 // pred_fallthru
      _
    // Predicated region
    $region18: #{tpu_custom_call.1} parent=1 // pred_check
      _
    $region19: #{tpu_custom_call.1} parent=1 // pred_check_branch
      %233 = sbr.rel (0) target = $region21
    $region20: #{tpu_custom_call.1} parent=1 // pred_region
      %s235 = ssub.s32 128, 128
      %236 = vsyncadd [#allocation5], %s235
      %s238 = sshll.u32 [#allocation6], 4
      %s239 = int_to_ptr.vmem [resolvable:$true] %s238
      %241 = dma.vmem_to_hbm [thread:$0]  %s239, 128, %s1, [#allocation5]
    $region21: #{tpu_custom_call.1} parent=1 // pred_fallthru
      _
    // Predicated region
    $region22: #{tpu_custom_call.1} parent=1 // pred_check
      _
    $region23: #{tpu_custom_call.1} parent=1 // pred_check_branch
      %243 = sbr.rel (0) target = $region25
    $region24: #{tpu_custom_call.1} parent=1 // pred_region
      %244 = dma.done [#allocation5], 128
    $region25: #{tpu_custom_call.1} parent=1 // pred_fallthru
      _
    %245 = vsyncpa [#allocation4], 1
    %246 = vsyncpa [#allocation5], 1

</llo_original>
